<compile_context>
chip_gen: v6e
topology: v6e:2x2x1
jax: 0.10.0
libtpu: 0.0.40
codegen_flags: <defaults>
</compile_context>

<pallas_src>
import functools

import jax
import jax.numpy as jnp
from jax.experimental import pallas as pl
from jax.experimental.pallas import tpu as pltpu


def _xw_kernel(x_ref, w_ref, xw_ref):
    # One-shot feature transform: xw = x @ W (f32 accumulate), stored bf16.
    xw_ref[...] = jnp.dot(
        x_ref[...], w_ref[...], preferred_element_type=jnp.float32
    ).astype(xw_ref.dtype)


def _aggregate_kernel(adj_ref, xw_ref, out_ref):
    # Row-tiled aggregation: out_tile = relu(adj_tile @ xw).
    z = jnp.dot(adj_ref[...], xw_ref[...], preferred_element_type=jnp.float32)
    out_ref[...] = jnp.maximum(z, 0.0).astype(out_ref.dtype)


def _pick_tile_n(n):
    for cand in (512, 256, 128, 64, 32, 16):
        if n % cand == 0:
            return cand
    return n


@functools.partial(jax.jit, static_argnames=("tile_n",))
def encoder_node_cora(x, adj, weight, *, tile_n=None):
    """relu(adj @ (x @ weight)) via two Pallas TPU kernels."""
    n, d_in = x.shape
    d_out = weight.shape[1]
    assert adj.shape == (n, n)
    assert weight.shape[0] == d_in

    if tile_n is None:
        tile_n = _pick_tile_n(n)
    assert n % tile_n == 0 and tile_n % 8 == 0

    # Lane-dense padding of the output feature dimension (e.g. 40 -> 128).
    d_pad = ((d_out + 127) // 128) * 128
    w_pad = weight.astype(jnp.float32)
    if d_pad != d_out:
        w_pad = jnp.pad(w_pad, ((0, 0), (0, d_pad - d_out)))

    # ---- kernel 1: xw = x @ W (single block, computed once, bf16 result) ----
    xw = pl.pallas_call(
        _xw_kernel,
        out_shape=jax.ShapeDtypeStruct((n, d_pad), jnp.bfloat16),
        grid_spec=pltpu.PrefetchScalarGridSpec(
            num_scalar_prefetch=0,
            grid=(1,),
            in_specs=[
                pl.BlockSpec((n, d_in), lambda i: (0, 0)),      # x (full)
                pl.BlockSpec((d_in, d_pad), lambda i: (0, 0)),  # W (full, padded)
            ],
            out_specs=pl.BlockSpec((n, d_pad), lambda i: (0, 0)),
        ),
        cost_estimate=pl.CostEstimate(
            flops=2 * n * d_in * d_pad,
            transcendentals=0,
            bytes_accessed=4 * n * d_in + 4 * d_in * d_pad + 2 * n * d_pad,
        ),
    )(x.astype(jnp.float32), w_pad)

    # ---- kernel 2: out = relu(adj @ xw), tiled over node rows ---------------
    adj_bf16 = adj.astype(jnp.bfloat16)  # halves the dominant N^2 HBM traffic

    # VMEM budget (double-buffered streams); keep headroom for v7x's 64 MiB.
    vmem_needed = 2 * (tile_n * n * 2 + n * d_pad * 2 + tile_n * d_pad * 4)
    vmem_limit = int(min(max(4 * vmem_needed, 8 << 20), 48 << 20))

    out_pad = pl.pallas_call(
        _aggregate_kernel,
        out_shape=jax.ShapeDtypeStruct((n, d_pad), x.dtype),
        grid_spec=pltpu.PrefetchScalarGridSpec(
            num_scalar_prefetch=0,
            grid=(n // tile_n,),
            in_specs=[
                pl.BlockSpec((tile_n, n), lambda i: (i, 0)),   # adj row tile (bf16)
                pl.BlockSpec((n, d_pad), lambda i: (0, 0)),    # xw (resident)
            ],
            out_specs=pl.BlockSpec((tile_n, d_pad), lambda i: (i, 0)),
        ),
        compiler_params=pltpu.CompilerParams(
            dimension_semantics=("parallel",),   # safe: no cross-step scratch
            vmem_limit_bytes=vmem_limit,
        ),
        cost_estimate=pl.CostEstimate(
            flops=2 * n * n * d_pad,
            transcendentals=0,
            bytes_accessed=2 * n * n + 2 * n * d_pad + 4 * n * d_pad,
        ),
    )(adj_bf16, xw)

    return out_pad[:, :d_out]


def glorot_init(key, input_dim, output_dim):
    # Mirrors the PyTorch init: rand(in, out) * r - r  with r = sqrt(1/(in+out))
    init_range = jnp.sqrt(1.0 / (input_dim + output_dim))
    u = jax.random.uniform(key, (input_dim, output_dim), dtype=jnp.float32)
    return u * init_range - init_range


def reference(x, adj, weight):
    return jnp.maximum(adj @ (x @ weight), 0.0)


if __name__ == "__main__":
    # Small-but-valid GCN shapes: N nodes, input_dim features.
    N = 128
    input_dim = 64
    hidden_dim = 16
    out_dim = 8
    output_dim = hidden_dim * 2 + out_dim  # 40

    key = jax.random.PRNGKey(0)
    k_x, k_adj, k_w = jax.random.split(key, 3)

    x = jax.random.normal(k_x, (N, input_dim), dtype=jnp.float32)

    # Symmetric, row-normalized dense adjacency (synthetic).
    a = (jax.random.uniform(k_adj, (N, N)) > 0.9).astype(jnp.float32)
    a = jnp.maximum(a, a.T) + jnp.eye(N, dtype=jnp.float32)
    adj = a / jnp.sum(a, axis=1, keepdims=True)

    weight = glorot_init(k_w, input_dim, output_dim)

    out = encoder_node_cora(x, adj, weight, tile_n=128)
    out = jax.block_until_ready(out)

    ref = reference(x, adj, weight)
    assert out.shape == (N, output_dim)
    # Tolerance covers bf16 rounding of adj / xw on the MXU (f32 accumulation).
    assert jnp.allclose(out, ref, atol=2e-2, rtol=2e-2), "mismatch vs reference"

    print("KERNEL_OK")
</pallas_src>

<mosaic_0001>
module attributes {stable_mosaic.version = 11 : i64} {
  func.func @_xw_kernel(%arg0: i32, %arg1: memref<128x64xf32, #tpu.memory_space<vmem>>, %arg2: memref<64x128xf32, #tpu.memory_space<vmem>>, %arg3: memref<128x128xbf16, #tpu.memory_space<vmem>>) attributes {dimension_semantics = [#tpu.dimension_semantics<arbitrary>], iteration_bounds = array<i64: 1>, scalar_prefetch = 0 : i64, scratch_operands = 0 : i64, tpu.core_type = #tpu.core_type<tc>, window_params = [{pipeline_mode = #tpu.pipeline_mode<synchronous>, transform_indices = @transform_0, window_bounds = array<i64: 128, 64>}, {pipeline_mode = #tpu.pipeline_mode<synchronous>, transform_indices = @transform_1, window_bounds = array<i64: 64, 128>}, {pipeline_mode = #tpu.pipeline_mode<synchronous>, transform_indices = @transform_2, window_bounds = array<i64: 128, 128>}]} {
    %c0 = arith.constant 0 : index
    %c0_0 = arith.constant 0 : index
    %0 = vector.load %arg1[%c0, %c0_0] : memref<128x64xf32, #tpu.memory_space<vmem>>, vector<128x64xf32>
    %c0_1 = arith.constant 0 : index
    %c0_2 = arith.constant 0 : index
    %1 = vector.load %arg2[%c0_1, %c0_2] : memref<64x128xf32, #tpu.memory_space<vmem>>, vector<64x128xf32>
    %cst = arith.constant dense<0.000000e+00> : vector<128x128xf32>
    %2 = tpu.matmul %0, %1, %cst {dimension_numbers = #tpu.dot_dimension_numbers<[1], [0], [0], [1], [0, 0, 1, 1], [], []>} : vector<128x64xf32>, vector<64x128xf32>, vector<128x128xf32> -> vector<128x128xf32>
    %3 = arith.truncf %2 : vector<128x128xf32> to vector<128x128xbf16>
    %c0_3 = arith.constant 0 : index
    %c0_4 = arith.constant 0 : index
    %4 = vector.load %arg3[%c0_3, %c0_4] : memref<128x128xbf16, #tpu.memory_space<vmem>>, vector<128x128xbf16>
    tpu.vector_store %arg3[%c0_3, %c0_4], %3 {strides = array<i32>} : memref<128x128xbf16, #tpu.memory_space<vmem>>, vector<128x128xbf16>,
    return
  }
  func.func @transform_0(%arg0: i32) -> (i32, i32) {
    %c0_i32 = arith.constant 0 : i32
    %c0_i32_0 = arith.constant 0 : i32
    %c0_i32_1 = arith.constant 0 : i32
    return %c0_i32, %c0_i32_0 : i32, i32
  }
  func.func @transform_1(%arg0: i32) -> (i32, i32) {
    %c0_i32 = arith.constant 0 : i32
    %c0_i32_0 = arith.constant 0 : i32
    %c0_i32_1 = arith.constant 0 : i32
    return %c0_i32, %c0_i32_0 : i32, i32
  }
  func.func @transform_2(%arg0: i32) -> (i32, i32) {
    %c0_i32 = arith.constant 0 : i32
    %c0_i32_0 = arith.constant 0 : i32
    %c0_i32_1 = arith.constant 0 : i32
    return %c0_i32, %c0_i32_0 : i32, i32
  }
}

module attributes {stable_mosaic.version = 11 : i64} {
  func.func @_aggregate_kernel(%arg0: i32, %arg1: memref<128x128xbf16, #tpu.memory_space<vmem>>, %arg2: memref<128x128xbf16, #tpu.memory_space<vmem>>, %arg3: memref<128x128xf32, #tpu.memory_space<vmem>>) attributes {dimension_semantics = [#tpu.dimension_semantics<parallel>], iteration_bounds = array<i64: 1>, scalar_prefetch = 0 : i64, scratch_operands = 0 : i64, tpu.core_type = #tpu.core_type<tc>, window_params = [{transform_indices = @transform_0, window_bounds = array<i64: 128, 128>}, {pipeline_mode = #tpu.pipeline_mode<synchronous>, transform_indices = @transform_1, window_bounds = array<i64: 128, 128>}, {transform_indices = @transform_2, window_bounds = array<i64: 128, 128>}]} {
    %c0 = arith.constant 0 : index
    %c0_0 = arith.constant 0 : index
    %0 = vector.load %arg1[%c0, %c0_0] : memref<128x128xbf16, #tpu.memory_space<vmem>>, vector<128x128xbf16>
    %c0_1 = arith.constant 0 : index
    %c0_2 = arith.constant 0 : index
    %1 = vector.load %arg2[%c0_1, %c0_2] : memref<128x128xbf16, #tpu.memory_space<vmem>>, vector<128x128xbf16>
    %cst = arith.constant dense<0.000000e+00> : vector<128x128xf32>
    %2 = tpu.matmul %0, %1, %cst {dimension_numbers = #tpu.dot_dimension_numbers<[1], [0], [0], [1], [0, 0, 1, 1], [], []>} : vector<128x128xbf16>, vector<128x128xbf16>, vector<128x128xf32> -> vector<128x128xf32>
    %cst_3 = arith.constant 0.000000e+00 : f32
    %3 = vector.broadcast %cst_3 : f32 to vector<128x128xf32>
    %4 = arith.maximumf %2, %3 : vector<128x128xf32>
    %c0_4 = arith.constant 0 : index
    %c0_5 = arith.constant 0 : index
    %5 = vector.load %arg3[%c0_4, %c0_5] : memref<128x128xf32, #tpu.memory_space<vmem>>, vector<128x128xf32>
    tpu.vector_store %arg3[%c0_4, %c0_5], %4 {strides = array<i32>} : memref<128x128xf32, #tpu.memory_space<vmem>>, vector<128x128xf32>,
    return
  }
  func.func @transform_0(%arg0: i32) -> (i32, i32) {
    %c0_i32 = arith.constant 0 : i32
    %c0_i32_0 = arith.constant 0 : i32
    return %arg0, %c0_i32 : i32, i32
  }
  func.func @transform_1(%arg0: i32) -> (i32, i32) {
    %c0_i32 = arith.constant 0 : i32
    %c0_i32_0 = arith.constant 0 : i32
    %c0_i32_1 = arith.constant 0 : i32
    return %c0_i32, %c0_i32_0 : i32, i32
  }
  func.func @transform_2(%arg0: i32) -> (i32, i32) {
    %c0_i32 = arith.constant 0 : i32
    %c0_i32_0 = arith.constant 0 : i32
    return %arg0, %c0_i32 : i32, i32
  }
}

</mosaic_0001>

<llo_original>
// kernel: encoder_node_cora.3
$region0: #{encoder_node_cora.3}
  #allocation0 [shape = 'u32[]', space=smem, size = 0x4, offset = 0x4, fixed_abs, tag = 'smem constant byte address 0x4 - core index']
  #allocation1 [shape = 'u32[144,128]{1,0:T(1,128)}', space=vmem, size = 0x12000, scoped, tag = 'internal scratch']
  %s0 = inlined_call_operand.vmem [shape: bf16[128,128], index: 0, kind: input, shape index: {}]
  %s1 = inlined_call_operand.vmem [shape: bf16[128,128], index: 1, kind: input, shape index: {}]
  %s2 = inlined_call_operand.vmem [shape: f32[128,128], index: 2, kind: output, shape index: {}]
  %s3 = sld [smem:[#allocation0]]
  $region18: #{encoder_node_cora.3} parent=0
    _
  %s5 = ssub.s32 1, %s3
  %s6 = scalar_select 0, %s5, %s3
  // Predicated region
  $region2: #{encoder_node_cora.3} parent=0 // pred_check
    _
  $region3: #{encoder_node_cora.3} parent=0 // pred_check_branch
    %8 = sbr.rel (0) target = $region5
  $region4: #{encoder_node_cora.3} parent=0 // pred_region
    _
  $region5: #{encoder_node_cora.3} parent=0 // pred_fallthru
    _
  // Predicated region
  $region6: #{encoder_node_cora.3} parent=0 // pred_check
    _
  $region7: #{encoder_node_cora.3} parent=0 // pred_check_branch
    %10 = sbr.rel (0) target = $region9
  $region8: #{encoder_node_cora.3} parent=0 // pred_region
    _
  $region9: #{encoder_node_cora.3} parent=0 // pred_fallthru
    _
  %v12 = vld [vmem:[%s0] sm:$0xf]
  %v13 = vld [vmem:[%s0 + $0x4] sm:$0xf]
  %v14 = vld [vmem:[%s0 + $0x8] sm:$0xf]
  %v15 = vld [vmem:[%s0 + $0xc] sm:$0xf]
  %v16 = vld [vmem:[%s0 + $0x10] sm:$0xf]
  %v17 = vld [vmem:[%s0 + $0x14] sm:$0xf]
  %v18 = vld [vmem:[%s0 + $0x18] sm:$0xf]
  %v19 = vld [vmem:[%s0 + $0x1c] sm:$0xf]
  %v20 = vld [vmem:[%s0 + $0x20] sm:$0xf]
  %v21 = vld [vmem:[%s0 + $0x24] sm:$0xf]
  %v22 = vld [vmem:[%s0 + $0x28] sm:$0xf]
  %v23 = vld [vmem:[%s0 + $0x2c] sm:$0xf]
  %v24 = vld [vmem:[%s0 + $0x30] sm:$0xf]
  %v25 = vld [vmem:[%s0 + $0x34] sm:$0xf]
  %v26 = vld [vmem:[%s0 + $0x38] sm:$0xf]
  %v27 = vld [vmem:[%s0 + $0x3c] sm:$0xf]
  %v28 = vld [vmem:[%s1] sm:$0xf]
  %v29 = vld [vmem:[%s1 + $0x4] sm:$0xf]
  %v30 = vld [vmem:[%s1 + $0x8] sm:$0xf]
  %v31 = vld [vmem:[%s1 + $0xc] sm:$0xf]
  %v32 = vld [vmem:[%s1 + $0x10] sm:$0xf]
  %v33 = vld [vmem:[%s1 + $0x14] sm:$0xf]
  %v34 = vld [vmem:[%s1 + $0x18] sm:$0xf]
  %v35 = vld [vmem:[%s1 + $0x1c] sm:$0xf]
  %v36 = vld [vmem:[%s1 + $0x20] sm:$0xf]
  %v37 = vld [vmem:[%s1 + $0x24] sm:$0xf]
  %v38 = vld [vmem:[%s1 + $0x28] sm:$0xf]
  %v39 = vld [vmem:[%s1 + $0x2c] sm:$0xf]
  %v40 = vld [vmem:[%s1 + $0x30] sm:$0xf]
  %v41 = vld [vmem:[%s1 + $0x34] sm:$0xf]
  %v42 = vld [vmem:[%s1 + $0x38] sm:$0xf]
  %v43 = vld [vmem:[%s1 + $0x3c] sm:$0xf]
  %v60 = vunpack.c.l.b16 %v12
  %v61 = vunpack.c.l.b16 %v13
  %v62 = vunpack.c.l.b16 %v14
  %v63 = vunpack.c.l.b16 %v15
  %v64 = vunpack.c.l.b16 %v16
  %v65 = vunpack.c.l.b16 %v17
  %v66 = vunpack.c.l.b16 %v18
  %v67 = vunpack.c.l.b16 %v19
  %v68 = vunpack.c.l.b16 %v20
  %v69 = vunpack.c.l.b16 %v21
  %v70 = vunpack.c.l.b16 %v22
  %v71 = vunpack.c.l.b16 %v23
  %v72 = vunpack.c.l.b16 %v24
  %v73 = vunpack.c.l.b16 %v25
  %v74 = vunpack.c.l.b16 %v26
  %v75 = vunpack.c.l.b16 %v27
  %v76 = vpack.c.b16 %v61, %v60
  %v77 = vpack.c.b16 %v63, %v62
  %v78 = vpack.c.b16 %v65, %v64
  %v79 = vpack.c.b16 %v67, %v66
  %v80 = vpack.c.b16 %v69, %v68
  %v81 = vpack.c.b16 %v71, %v70
  %v82 = vpack.c.b16 %v73, %v72
  %v83 = vpack.c.b16 %v75, %v74
  %v108 = vunpack.c.l.b16 %v28
  %v109 = vunpack.c.l.b16 %v29
  %v110 = vunpack.c.l.b16 %v30
  %v111 = vunpack.c.l.b16 %v31
  %v112 = vunpack.c.l.b16 %v32
  %v113 = vunpack.c.l.b16 %v33
  %v114 = vunpack.c.l.b16 %v34
  %v115 = vunpack.c.l.b16 %v35
  %v116 = vunpack.c.l.b16 %v36
  %v117 = vunpack.c.l.b16 %v37
  %v118 = vunpack.c.l.b16 %v38
  %v119 = vunpack.c.l.b16 %v39
  %v120 = vunpack.c.l.b16 %v40
  %v121 = vunpack.c.l.b16 %v41
  %v122 = vunpack.c.l.b16 %v42
  %v123 = vunpack.c.l.b16 %v43
  %v124 = vpack.c.b16 %v109, %v108
  %v125 = vpack.c.b16 %v111, %v110
  %v126 = vpack.c.b16 %v113, %v112
  %v127 = vpack.c.b16 %v115, %v114
  %v128 = vpack.c.b16 %v117, %v116
  %v129 = vpack.c.b16 %v119, %v118
  %v130 = vpack.c.b16 %v121, %v120
  %v131 = vpack.c.b16 %v123, %v122
  %140 = vmatprep.subr.bf16.mxu0 0
  %141 = vmatpush1.bf16.msra.mxu0 %v131
  %142 = vmatprep.subr.bf16.mxu0 0
  %143 = vmatpush1.bf16.msra.mxu0 %v130
  %144 = vmatprep.subr.bf16.mxu0 0
  %145 = vmatpush1.bf16.msra.mxu0 %v129
  %146 = vmatprep.subr.bf16.mxu0 0
  %147 = vmatpush1.bf16.msra.mxu0 %v128
  %148 = vmatprep.subr.bf16.mxu0 0
  %149 = vmatpush1.bf16.msra.mxu0 %v127
  %150 = vmatprep.subr.bf16.mxu0 0
  %151 = vmatpush1.bf16.msra.mxu0 %v126
  %152 = vmatprep.subr.bf16.mxu0 0
  %153 = vmatpush1.bf16.msra.mxu0 %v125
  %154 = vmatprep.subr.bf16.mxu0 0
  %155 = vmatpush1.bf16.msra.mxu0 %v124
  %156 = vmatprep.subr.bf16.mxu0 0
  %157 = vmatpush2.bf16.msra.mxu0 0
  %158 = vmatprep.subr.bf16.mxu0 0
  %159 = vmatpush2.bf16.msra.mxu0 0
  %160 = vmatprep.subr.bf16.mxu0 0
  %161 = vmatpush2.bf16.msra.mxu0 0
  %162 = vmatprep.subr.bf16.mxu0 0
  %163 = vmatpush2.bf16.msra.mxu0 0
  %164 = vmatprep.subr.bf16.mxu0 0
  %165 = vmatpush2.bf16.msra.mxu0 0
  %166 = vmatprep.subr.bf16.mxu0 0
  %167 = vmatpush2.bf16.msra.mxu0 0
  %168 = vmatprep.subr.bf16.mxu0 0
  %169 = vmatpush2.bf16.msra.mxu0 0
  %170 = vmatprep.subr.bf16.mxu0 0
  %171 = vmatpush2.bf16.msra.mxu0 0
  %172 = vmatprep.mubr.bf16.mxu0 0
  %173 = vmatmul.mubr.bf16.gmra.mxu0 %v76
  %v174 = vpop.f32.mrf.mxu0
  %v175 = vadd.f32 0.0, %v174
  %v176 = vpop.f32.mrf.mxu0
  %v177 = vpop.f32.mrf.mxu0
  %v178 = vadd.f32 0.0, %v177
  %v179 = vpop.f32.mrf.mxu0
  %180 = vmatprep.mubr.bf16.mxu0 0
  %181 = vmatmul.mubr.bf16.gmra.mxu0 %v77
  %v182 = vpop.f32.mrf.mxu0
  %v183 = vadd.f32 0.0, %v182
  %v184 = vpop.f32.mrf.mxu0
  %v185 = vpop.f32.mrf.mxu0
  %v186 = vadd.f32 0.0, %v185
  %v187 = vpop.f32.mrf.mxu0
  %188 = vmatprep.mubr.bf16.mxu0 0
  %189 = vmatmul.mubr.bf16.gmra.mxu0 %v78
  %v190 = vpop.f32.mrf.mxu0
  %v191 = vadd.f32 0.0, %v190
  %v192 = vpop.f32.mrf.mxu0
  %v193 = vpop.f32.mrf.mxu0
  %v194 = vadd.f32 0.0, %v193
  %v195 = vpop.f32.mrf.mxu0
  %196 = vmatprep.mubr.bf16.mxu0 0
  %197 = vmatmul.mubr.bf16.gmra.mxu0 %v79
  %v198 = vpop.f32.mrf.mxu0
  %v199 = vadd.f32 0.0, %v198
  %v200 = vpop.f32.mrf.mxu0
  %v201 = vpop.f32.mrf.mxu0
  %v202 = vadd.f32 0.0, %v201
  %v203 = vpop.f32.mrf.mxu0
  %204 = vmatprep.mubr.bf16.mxu0 0
  %205 = vmatmul.mubr.bf16.gmra.mxu0 %v80
  %v206 = vpop.f32.mrf.mxu0
  %v207 = vadd.f32 0.0, %v206
  %v208 = vpop.f32.mrf.mxu0
  %v209 = vpop.f32.mrf.mxu0
  %v210 = vadd.f32 0.0, %v209
  %v211 = vpop.f32.mrf.mxu0
  %212 = vmatprep.mubr.bf16.mxu0 0
  %213 = vmatmul.mubr.bf16.gmra.mxu0 %v81
  %v214 = vpop.f32.mrf.mxu0
  %v215 = vadd.f32 0.0, %v214
  %v216 = vpop.f32.mrf.mxu0
  %v217 = vpop.f32.mrf.mxu0
  %v218 = vadd.f32 0.0, %v217
  %v219 = vpop.f32.mrf.mxu0
  %220 = vmatprep.mubr.bf16.mxu0 0
  %221 = vmatmul.mubr.bf16.gmra.mxu0 %v82
  %v222 = vpop.f32.mrf.mxu0
  %v223 = vadd.f32 0.0, %v222
  %v224 = vpop.f32.mrf.mxu0
  %v225 = vpop.f32.mrf.mxu0
  %v226 = vadd.f32 0.0, %v225
  %v227 = vpop.f32.mrf.mxu0
  %228 = vmatprep.mubr.bf16.mxu0 0
  %229 = vmatmul.mubr.bf16.gmra.mxu0 %v83
  %v230 = vpop.f32.mrf.mxu0
  %v231 = vadd.f32 0.0, %v230
  %v232 = vpop.f32.mrf.mxu0
  %v233 = vpop.f32.mrf.mxu0
  %v234 = vadd.f32 0.0, %v233
  %v235 = vpop.f32.mrf.mxu0
  %236 = vdwg.mxu0
  %v237 = vmax.f32 %v175, 0.0
  %v238 = vmax.f32 %v178, 0.0
  %v239 = vmax.f32 %v183, 0.0
  %v240 = vmax.f32 %v186, 0.0
  %v241 = vmax.f32 %v191, 0.0
  %v242 = vmax.f32 %v194, 0.0
  %v243 = vmax.f32 %v199, 0.0
  %v244 = vmax.f32 %v202, 0.0
  %v245 = vmax.f32 %v207, 0.0
  %v246 = vmax.f32 %v210, 0.0
  %v247 = vmax.f32 %v215, 0.0
  %v248 = vmax.f32 %v218, 0.0
  %v249 = vmax.f32 %v223, 0.0
  %v250 = vmax.f32 %v226, 0.0
  %v251 = vmax.f32 %v231, 0.0
  %v252 = vmax.f32 %v234, 0.0
  %253 = vst [vmem:[%s2] sm:$0xff] %v237
  %254 = vst [vmem:[%s2 + $0x8] sm:$0xff] %v238
  %255 = vst [vmem:[%s2 + $0x10] sm:$0xff] %v239
  %256 = vst [vmem:[%s2 + $0x18] sm:$0xff] %v240
  %257 = vst [vmem:[%s2 + $0x20] sm:$0xff] %v241
  %258 = vst [vmem:[%s2 + $0x28] sm:$0xff] %v242
  %259 = vst [vmem:[%s2 + $0x30] sm:$0xff] %v243
  %260 = vst [vmem:[%s2 + $0x38] sm:$0xff] %v244
  %261 = vst [vmem:[%s2 + $0x40] sm:$0xff] %v245
  %262 = vst [vmem:[%s2 + $0x48] sm:$0xff] %v246
  %263 = vst [vmem:[%s2 + $0x50] sm:$0xff] %v247
  %264 = vst [vmem:[%s2 + $0x58] sm:$0xff] %v248
  %265 = vst [vmem:[%s2 + $0x60] sm:$0xff] %v249
  %266 = vst [vmem:[%s2 + $0x68] sm:$0xff] %v250
  %267 = vst [vmem:[%s2 + $0x70] sm:$0xff] %v251
  %268 = vst [vmem:[%s2 + $0x78] sm:$0xff] %v252
  // Predicated region
  $region10: #{encoder_node_cora.3} parent=0 // pred_check
    _
  $region11: #{encoder_node_cora.3} parent=0 // pred_check_branch
    %270 = sbr.rel (0) target = $region13
  $region12: #{encoder_node_cora.3} parent=0 // pred_region
    _
  $region13: #{encoder_node_cora.3} parent=0 // pred_fallthru
    _
  // Predicated region
  $region14: #{encoder_node_cora.3} parent=0 // pred_check
    _
  $region15: #{encoder_node_cora.3} parent=0 // pred_check_branch
    %272 = sbr.rel (0) target = $region17
  $region16: #{encoder_node_cora.3} parent=0 // pred_region
    _
  $region17: #{encoder_node_cora.3} parent=0 // pred_fallthru
    _

// kernel: encoder_node_cora.2
$region0: #{encoder_node_cora.2}
  #allocation0 [shape = 'u32[]', space=smem, size = 0x4, offset = 0x4, fixed_abs, tag = 'smem constant byte address 0x4 - core index']
  #allocation1 [shape = 'u32[144,128]{1,0:T(1,128)}', space=vmem, size = 0x12000, scoped, tag = 'internal scratch']
  %s0 = inlined_call_operand.vmem [shape: f32[128,64], index: 0, kind: input, shape index: {}]
  %s1 = inlined_call_operand.vmem [shape: f32[64,128], index: 1, kind: input, shape index: {}]
  %s2 = inlined_call_operand.vmem [shape: bf16[128,128], index: 2, kind: output, shape index: {}]
  %s3 = sld [smem:[#allocation0]]
  $region18: #{encoder_node_cora.2} parent=0
    _
  %s5 = ssub.s32 1, %s3
  %s6 = scalar_select 0, %s5, %s3
  // Predicated region
  $region2: #{encoder_node_cora.2} parent=0 // pred_check
    _
  $region3: #{encoder_node_cora.2} parent=0 // pred_check_branch
    %8 = sbr.rel (0) target = $region5
  $region4: #{encoder_node_cora.2} parent=0 // pred_region
    _
  $region5: #{encoder_node_cora.2} parent=0 // pred_fallthru
    _
  // Predicated region
  $region6: #{encoder_node_cora.2} parent=0 // pred_check
    _
  $region7: #{encoder_node_cora.2} parent=0 // pred_check_branch
    %10 = sbr.rel (0) target = $region9
  $region8: #{encoder_node_cora.2} parent=0 // pred_region
    _
  $region9: #{encoder_node_cora.2} parent=0 // pred_fallthru
    _
  %v11 = vld [vmem:[%s0] sm:$0xff]
  %v12 = vld [vmem:[%s0 + $0x8] sm:$0xff]
  %v13 = vld [vmem:[%s0 + $0x10] sm:$0xff]
  %v14 = vld [vmem:[%s0 + $0x18] sm:$0xff]
  %v15 = vld [vmem:[%s0 + $0x20] sm:$0xff]
  %v16 = vld [vmem:[%s0 + $0x28] sm:$0xff]
  %v17 = vld [vmem:[%s0 + $0x30] sm:$0xff]
  %v18 = vld [vmem:[%s0 + $0x38] sm:$0xff]
  %v19 = vld [vmem:[%s0 + $0x40] sm:$0xff]
  %v20 = vld [vmem:[%s0 + $0x48] sm:$0xff]
  %v21 = vld [vmem:[%s0 + $0x50] sm:$0xff]
  %v22 = vld [vmem:[%s0 + $0x58] sm:$0xff]
  %v23 = vld [vmem:[%s0 + $0x60] sm:$0xff]
  %v24 = vld [vmem:[%s0 + $0x68] sm:$0xff]
  %v25 = vld [vmem:[%s0 + $0x70] sm:$0xff]
  %v26 = vld [vmem:[%s0 + $0x78] sm:$0xff]
  %v27 = vld [vmem:[%s1] sm:$0xff]
  %v28 = vld [vmem:[%s1 + $0x8] sm:$0xff]
  %v29 = vld [vmem:[%s1 + $0x10] sm:$0xff]
  %v30 = vld [vmem:[%s1 + $0x18] sm:$0xff]
  %v31 = vld [vmem:[%s1 + $0x20] sm:$0xff]
  %v32 = vld [vmem:[%s1 + $0x28] sm:$0xff]
  %v33 = vld [vmem:[%s1 + $0x30] sm:$0xff]
  %v34 = vld [vmem:[%s1 + $0x38] sm:$0xff]
  %vm35 = vcmask 523264
  %v37 = vsel %vm35, %v11, 0
  %v40 = vsel %vm35, %v12, 0
  %v43 = vsel %vm35, %v13, 0
  %v46 = vsel %vm35, %v14, 0
  %v49 = vsel %vm35, %v15, 0
  %v52 = vsel %vm35, %v16, 0
  %v55 = vsel %vm35, %v17, 0
  %v58 = vsel %vm35, %v18, 0
  %v61 = vsel %vm35, %v19, 0
  %v64 = vsel %vm35, %v20, 0
  %v67 = vsel %vm35, %v21, 0
  %v70 = vsel %vm35, %v22, 0
  %v73 = vsel %vm35, %v23, 0
  %v76 = vsel %vm35, %v24, 0
  %v79 = vsel %vm35, %v25, 0
  %v82 = vsel %vm35, %v26, 0
  %84 = vmatprep.subr.mxu0 0.0
  %85 = vmatpush1.msra.mxu0 0.0
  %86 = vmatprep.subr.mxu0 0.0
  %87 = vmatpush1.msra.mxu0 0.0
  %88 = vmatprep.subr.mxu0 0.0
  %89 = vmatpush1.msra.mxu0 0.0
  %90 = vmatprep.subr.mxu0 0.0
  %91 = vmatpush1.msra.mxu0 0.0
  %92 = vmatprep.subr.mxu0 0.0
  %93 = vmatpush1.msra.mxu0 0.0
  %94 = vmatprep.subr.mxu0 0.0
  %95 = vmatpush1.msra.mxu0 0.0
  %96 = vmatprep.subr.mxu0 0.0
  %97 = vmatpush1.msra.mxu0 0.0
  %98 = vmatprep.subr.mxu0 0.0
  %99 = vmatpush1.msra.mxu0 0.0
  %100 = vmatprep.subr.mxu0 0.0
  %101 = vmatpush1.msra.mxu0 %v34
  %102 = vmatprep.subr.mxu0 0.0
  %103 = vmatpush1.msra.mxu0 %v33
  %104 = vmatprep.subr.mxu0 0.0
  %105 = vmatpush1.msra.mxu0 %v32
  %106 = vmatprep.subr.mxu0 0.0
  %107 = vmatpush1.msra.mxu0 %v31
  %108 = vmatprep.subr.mxu0 0.0
  %109 = vmatpush1.msra.mxu0 %v30
  %110 = vmatprep.subr.mxu0 0.0
  %111 = vmatpush1.msra.mxu0 %v29
  %112 = vmatprep.subr.mxu0 0.0
  %113 = vmatpush1.msra.mxu0 %v28
  %114 = vmatprep.subr.mxu0 0.0
  %115 = vmatpush1.msra.mxu0 %v27
  %116 = vmatprep.subr.mxu0 0.0
  %117 = vmatpush2.msra.mxu0 0.0
  %118 = vmatprep.subr.mxu0 0.0
  %119 = vmatpush2.msra.mxu0 0.0
  %120 = vmatprep.subr.mxu0 0.0
  %121 = vmatpush2.msra.mxu0 0.0
  %122 = vmatprep.subr.mxu0 0.0
  %123 = vmatpush2.msra.mxu0 0.0
  %124 = vmatprep.subr.mxu0 0.0
  %125 = vmatpush2.msra.mxu0 0.0
  %126 = vmatprep.subr.mxu0 0.0
  %127 = vmatpush2.msra.mxu0 0.0
  %128 = vmatprep.subr.mxu0 0.0
  %129 = vmatpush2.msra.mxu0 0.0
  %130 = vmatprep.subr.mxu0 0.0
  %131 = vmatpush2.msra.mxu0 0.0
  %132 = vmatprep.subr.mxu0 0.0
  %133 = vmatpush2.msra.mxu0 0.0
  %134 = vmatprep.subr.mxu0 0.0
  %135 = vmatpush2.msra.mxu0 0.0
  %136 = vmatprep.subr.mxu0 0.0
  %137 = vmatpush2.msra.mxu0 0.0
  %138 = vmatprep.subr.mxu0 0.0
  %139 = vmatpush2.msra.mxu0 0.0
  %140 = vmatprep.subr.mxu0 0.0
  %141 = vmatpush2.msra.mxu0 0.0
  %142 = vmatprep.subr.mxu0 0.0
  %143 = vmatpush2.msra.mxu0 0.0
  %144 = vmatprep.subr.mxu0 0.0
  %145 = vmatpush2.msra.mxu0 0.0
  %146 = vmatprep.subr.mxu0 0.0
  %147 = vmatpush2.msra.mxu0 0.0
  %148 = vmatprep.mubr.f32.mxu0 0.0
  %149 = vmatmul.mubr.f32.gmra.mxu0 %v37
  %v150 = vpop.f32.mrf.mxu0
  %v151 = vadd.f32 0.0, %v150
  %v152 = vpop.f32.mrf.mxu0
  %153 = vmatprep.mubr.f32.mxu0 0.0
  %154 = vmatmul.mubr.f32.gmra.mxu0 %v40
  %v155 = vpop.f32.mrf.mxu0
  %v156 = vadd.f32 0.0, %v155
  %v157 = vpop.f32.mrf.mxu0
  %158 = vmatprep.mubr.f32.mxu0 0.0
  %159 = vmatmul.mubr.f32.gmra.mxu0 %v43
  %v160 = vpop.f32.mrf.mxu0
  %v161 = vadd.f32 0.0, %v160
  %v162 = vpop.f32.mrf.mxu0
  %163 = vmatprep.mubr.f32.mxu0 0.0
  %164 = vmatmul.mubr.f32.gmra.mxu0 %v46
  %v165 = vpop.f32.mrf.mxu0
  %v166 = vadd.f32 0.0, %v165
  %v167 = vpop.f32.mrf.mxu0
  %168 = vmatprep.mubr.f32.mxu0 0.0
  %169 = vmatmul.mubr.f32.gmra.mxu0 %v49
  %v170 = vpop.f32.mrf.mxu0
  %v171 = vadd.f32 0.0, %v170
  %v172 = vpop.f32.mrf.mxu0
  %173 = vmatprep.mubr.f32.mxu0 0.0
  %174 = vmatmul.mubr.f32.gmra.mxu0 %v52
  %v175 = vpop.f32.mrf.mxu0
  %v176 = vadd.f32 0.0, %v175
  %v177 = vpop.f32.mrf.mxu0
  %178 = vmatprep.mubr.f32.mxu0 0.0
  %179 = vmatmul.mubr.f32.gmra.mxu0 %v55
  %v180 = vpop.f32.mrf.mxu0
  %v181 = vadd.f32 0.0, %v180
  %v182 = vpop.f32.mrf.mxu0
  %183 = vmatprep.mubr.f32.mxu0 0.0
  %184 = vmatmul.mubr.f32.gmra.mxu0 %v58
  %v185 = vpop.f32.mrf.mxu0
  %v186 = vadd.f32 0.0, %v185
  %v187 = vpop.f32.mrf.mxu0
  %188 = vmatprep.mubr.f32.mxu0 0.0
  %189 = vmatmul.mubr.f32.gmra.mxu0 %v61
  %v190 = vpop.f32.mrf.mxu0
  %v191 = vadd.f32 0.0, %v190
  %v192 = vpop.f32.mrf.mxu0
  %193 = vmatprep.mubr.f32.mxu0 0.0
  %194 = vmatmul.mubr.f32.gmra.mxu0 %v64
  %v195 = vpop.f32.mrf.mxu0
  %v196 = vadd.f32 0.0, %v195
  %v197 = vpop.f32.mrf.mxu0
  %198 = vmatprep.mubr.f32.mxu0 0.0
  %199 = vmatmul.mubr.f32.gmra.mxu0 %v67
  %v200 = vpop.f32.mrf.mxu0
  %v201 = vadd.f32 0.0, %v200
  %v202 = vpop.f32.mrf.mxu0
  %203 = vmatprep.mubr.f32.mxu0 0.0
  %204 = vmatmul.mubr.f32.gmra.mxu0 %v70
  %v205 = vpop.f32.mrf.mxu0
  %v206 = vadd.f32 0.0, %v205
  %v207 = vpop.f32.mrf.mxu0
  %208 = vmatprep.mubr.f32.mxu0 0.0
  %209 = vmatmul.mubr.f32.gmra.mxu0 %v73
  %v210 = vpop.f32.mrf.mxu0
  %v211 = vadd.f32 0.0, %v210
  %v212 = vpop.f32.mrf.mxu0
  %213 = vmatprep.mubr.f32.mxu0 0.0
  %214 = vmatmul.mubr.f32.gmra.mxu0 %v76
  %v215 = vpop.f32.mrf.mxu0
  %v216 = vadd.f32 0.0, %v215
  %v217 = vpop.f32.mrf.mxu0
  %218 = vmatprep.mubr.f32.mxu0 0.0
  %219 = vmatmul.mubr.f32.gmra.mxu0 %v79
  %v220 = vpop.f32.mrf.mxu0
  %v221 = vadd.f32 0.0, %v220
  %v222 = vpop.f32.mrf.mxu0
  %223 = vmatprep.mubr.f32.mxu0 0.0
  %224 = vmatmul.mubr.f32.gmra.mxu0 %v82
  %v225 = vpop.f32.mrf.mxu0
  %v226 = vadd.f32 0.0, %v225
  %v227 = vpop.f32.mrf.mxu0
  %228 = vdwg.mxu0
  %v229 = vpack.c.bf16 %v156, %v151
  %v230 = vpack.c.bf16 %v166, %v161
  %v231 = vpack.c.bf16 %v176, %v171
  %v232 = vpack.c.bf16 %v186, %v181
  %v233 = vpack.c.bf16 %v196, %v191
  %v234 = vpack.c.bf16 %v206, %v201
  %v235 = vpack.c.bf16 %v216, %v211
  %v236 = vpack.c.bf16 %v226, %v221
  %v245 = vunpack.c.l.b16 %v229
  %v246 = vunpack.c.h.b16 %v229
  %v247 = vunpack.c.l.b16 %v230
  %v248 = vunpack.c.h.b16 %v230
  %v249 = vunpack.c.l.b16 %v231
  %v250 = vunpack.c.h.b16 %v231
  %v251 = vunpack.c.l.b16 %v232
  %v252 = vunpack.c.h.b16 %v232
  %v253 = vunpack.c.l.b16 %v233
  %v254 = vunpack.c.h.b16 %v233
  %v255 = vunpack.c.l.b16 %v234
  %v256 = vunpack.c.h.b16 %v234
  %v257 = vunpack.c.l.b16 %v235
  %v258 = vunpack.c.h.b16 %v235
  %v259 = vunpack.c.l.b16 %v236
  %v260 = vunpack.c.h.b16 %v236
  %v261 = vpack.c.b16 %v245, %v245
  %v262 = vpack.c.b16 %v246, %v246
  %v263 = vpack.c.b16 %v247, %v247
  %v264 = vpack.c.b16 %v248, %v248
  %v265 = vpack.c.b16 %v249, %v249
  %v266 = vpack.c.b16 %v250, %v250
  %v267 = vpack.c.b16 %v251, %v251
  %v268 = vpack.c.b16 %v252, %v252
  %v269 = vpack.c.b16 %v253, %v253
  %v270 = vpack.c.b16 %v254, %v254
  %v271 = vpack.c.b16 %v255, %v255
  %v272 = vpack.c.b16 %v256, %v256
  %v273 = vpack.c.b16 %v257, %v257
  %v274 = vpack.c.b16 %v258, %v258
  %v275 = vpack.c.b16 %v259, %v259
  %v276 = vpack.c.b16 %v260, %v260
  %293 = vst [vmem:[%s2] sm:$0xf] %v261
  %294 = vst [vmem:[%s2 + $0x4] sm:$0xf] %v262
  %295 = vst [vmem:[%s2 + $0x8] sm:$0xf] %v263
  %296 = vst [vmem:[%s2 + $0xc] sm:$0xf] %v264
  %297 = vst [vmem:[%s2 + $0x10] sm:$0xf] %v265
  %298 = vst [vmem:[%s2 + $0x14] sm:$0xf] %v266
  %299 = vst [vmem:[%s2 + $0x18] sm:$0xf] %v267
  %300 = vst [vmem:[%s2 + $0x1c] sm:$0xf] %v268
  %301 = vst [vmem:[%s2 + $0x20] sm:$0xf] %v269
  %302 = vst [vmem:[%s2 + $0x24] sm:$0xf] %v270
  %303 = vst [vmem:[%s2 + $0x28] sm:$0xf] %v271
  %304 = vst [vmem:[%s2 + $0x2c] sm:$0xf] %v272
  %305 = vst [vmem:[%s2 + $0x30] sm:$0xf] %v273
  %306 = vst [vmem:[%s2 + $0x34] sm:$0xf] %v274
  %307 = vst [vmem:[%s2 + $0x38] sm:$0xf] %v275
  %308 = vst [vmem:[%s2 + $0x3c] sm:$0xf] %v276
  // Predicated region
  $region10: #{encoder_node_cora.2} parent=0 // pred_check
    _
  $region11: #{encoder_node_cora.2} parent=0 // pred_check_branch
    %310 = sbr.rel (0) target = $region13
  $region12: #{encoder_node_cora.2} parent=0 // pred_region
    _
  $region13: #{encoder_node_cora.2} parent=0 // pred_fallthru
    _
  // Predicated region
  $region14: #{encoder_node_cora.2} parent=0 // pred_check
    _
  $region15: #{encoder_node_cora.2} parent=0 // pred_check_branch
    %312 = sbr.rel (0) target = $region17
  $region16: #{encoder_node_cora.2} parent=0 // pred_region
    _
  $region17: #{encoder_node_cora.2} parent=0 // pred_fallthru
    _

</llo_original>
